<compile_context>
chip_gen: v6e
topology: v6e:2x2x1
jax: 0.10.0
libtpu: 0.0.40
codegen_flags: <defaults>
</compile_context>

<pallas_src>
import functools

import jax
import jax.numpy as jnp
from jax import lax
from jax.experimental import pallas as pl
from jax.experimental.pallas import tpu as pltpu

_LANE = 128
_SUBLANE = 8


def _round_up(x, m):
    return ((x + m - 1) // m) * m


def _estimate_vmem(tile, d, itemsize):
    # 2 double-buffered (tile, D) input blocks (im + s) + f32 scores/cost temporaries
    # + slack for diag/out blocks and compiler scratch.
    return 4 * tile * d * itemsize + 3 * tile * tile * 4 + (2 << 20)


def _select_tile(b, d, itemsize, budget=32 * 1024 * 1024):
    """Largest 128-aligned square tile (<= 1024) that fits the VMEM budget."""
    cap = _LANE
    for cand in (1024, 512, 256, 128):
        if _estimate_vmem(cand, d, itemsize) <= budget:
            cap = cand
            break
    # TODO(synk): for extremely large D where even a 128-row full-D tile does not fit
    # VMEM, a k-tiled contraction would be required; typical embedding dims are fine.
    return min(cap, _round_up(b, _LANE))


# ---------------------------------------------------------------------------
# Kernel 1: diag[i] = sum_d im[i, d] * s[i, d]   (diagonal of im @ s.T, O(B*D))
# ---------------------------------------------------------------------------
def _diag_kernel(im_ref, s_ref, diag_ref):
    prod = im_ref[...].astype(jnp.float32) * s_ref[...].astype(jnp.float32)
    diag_ref[...] = jnp.sum(prod, axis=1, keepdims=True)


# ---------------------------------------------------------------------------
# Kernel 2: one MXU dot per (i, j) tile + fused hinge epilogue + lane-dense partial
# ---------------------------------------------------------------------------
def _loss_kernel(dcol_ref, drow_ref, im_ref, s_ref, out_ref, *, tm, tn, b_valid,
                 padded):
    i = pl.program_id(0)
    j = pl.program_id(1)

    # MXU matmul in the native input dtype, f32 accumulation; contracting on dim 1
    # of both operands avoids materializing s.T.
    scores = lax.dot_general(
        im_ref[...], s_ref[...],
        dimension_numbers=(((1,), (1,)), ((), ())),
        preferred_element_type=jnp.float32)                  # (tm, tn) f32

    d_i = dcol_ref[...]                                      # (tm, 1), margin folded in
    d_j = drow_ref[...]                                      # (1, tn), margin folded in
    cost = (jnp.maximum(scores - d_i, 0.0) +
            jnp.maximum(scores - d_j, 0.0))

    def _partial(c):
        # Sublane-group reduction to a lane-dense (8, tn) partial: pure vreg adds,
        # no cross-lane XLU reduce, no scalar broadcast.
        return c.reshape(tm // _SUBLANE, _SUBLANE, tn).sum(axis=0)

    needs_mask = i == j
    if padded:
        needs_mask = jnp.logical_or(
            needs_mask,
            jnp.logical_or(i == pl.num_programs(0) - 1,
                           j == pl.num_programs(1) - 1))

    @pl.when(needs_mask)
    def _():
        rows = i * tm + lax.broadcasted_iota(jnp.int32, (tm, tn), 0)
        cols = j * tn + lax.broadcasted_iota(jnp.int32, (tm, tn), 1)
        kill = rows == cols                                  # exact diagonal zeroing
        if padded:
            kill = jnp.logical_or(
                kill, jnp.logical_or(rows >= b_valid, cols >= b_valid))
        out_ref[...] = _partial(jnp.where(kill, 0.0, cost))

    @pl.when(jnp.logical_not(needs_mask))
    def _():
        out_ref[...] = _partial(cost)


def contrastive_loss(im, s, margin=0.0, *, tile=None):
    """Pallas TPU ContrastiveLoss forward (cosine_sim, max_violation=False)."""
    # TODO(synk): order_sim measure and max_violation=True variants are not
    # implemented (module defaults: measure=False -> cosine_sim, max_violation=False).
    B, D = im.shape
    assert s.shape == (B, D), (im.shape, s.shape)

    itemsize = jnp.dtype(im.dtype).itemsize
    t = int(tile) if tile is not None else _select_tile(B, D, itemsize)
    assert t % _LANE == 0 and t >= _LANE, t

    b_pad = _round_up(B, t)
    n_blk = b_pad // t
    padded = b_pad != B

    if padded:
        pad = b_pad - B
        im_p = jnp.pad(im, ((0, pad), (0, 0)))
        s_p = jnp.pad(s, ((0, pad), (0, 0)))
    else:
        im_p, s_p = im, s

    est = _estimate_vmem(t, D, itemsize)
    vmem_limit = None if est < (12 << 20) else (48 << 20)

    # --- diag[i] = <im[i], s[i]> : one full-D block per row tile -----------------
    diag = pl.pallas_call(
        _diag_kernel,
        out_shape=jax.ShapeDtypeStruct((b_pad, 1), jnp.float32),
        grid_spec=pltpu.PrefetchScalarGridSpec(
            num_scalar_prefetch=0,
            grid=(n_blk,),
            in_specs=[pl.BlockSpec((t, D), lambda i: (i, 0)),
                      pl.BlockSpec((t, D), lambda i: (i, 0))],
            out_specs=pl.BlockSpec((t, 1), lambda i: (i, 0)),
        ),
        compiler_params=pltpu.CompilerParams(
            dimension_semantics=("parallel",),
            vmem_limit_bytes=vmem_limit),
    )(im_p, s_p)

    # Fold the margin into the diag operands (removes a per-tile VPU pass in-kernel).
    diag_adj = diag - jnp.float32(margin)
    diag_col = diag_adj                       # (b_pad, 1) f32, for rows i
    diag_row = diag_adj.reshape(1, b_pad)     # (1, b_pad) f32, for cols j

    cost_hint = pl.CostEstimate(
        flops=int(2 * b_pad * b_pad * D + 6 * b_pad * b_pad),
        transcendentals=0,
        bytes_accessed=int((1 + n_blk) * b_pad * D * itemsize
                           + n_blk * _SUBLANE * b_pad * 4 + 2 * b_pad * 4),
    )

    out = pl.pallas_call(
        functools.partial(_loss_kernel, tm=t, tn=t, b_valid=B, padded=padded),
        out_shape=jax.ShapeDtypeStruct((n_blk * _SUBLANE, b_pad), jnp.float32),
        grid_spec=pltpu.PrefetchScalarGridSpec(
            num_scalar_prefetch=0,
            grid=(n_blk, n_blk),
            in_specs=[
                pl.BlockSpec((t, 1), lambda i, j: (i, 0)),    # diag for rows i
                pl.BlockSpec((1, t), lambda i, j: (0, j)),    # diag for cols j
                pl.BlockSpec((t, D), lambda i, j: (i, 0)),    # im row tile (full D)
                pl.BlockSpec((t, D), lambda i, j: (j, 0)),    # s  row tile (full D)
            ],
            out_specs=pl.BlockSpec((_SUBLANE, t), lambda i, j: (i, j)),
        ),
        compiler_params=pltpu.CompilerParams(
            dimension_semantics=("parallel", "parallel"),
            vmem_limit_bytes=vmem_limit),
        cost_estimate=cost_hint,
    )(diag_col, diag_row, im_p, s_p)

    # Each (8, t) block sums to its tile's partial; dense sum gives the total loss.
    return jnp.sum(out)


def _reference(im, s, margin=0.0):
    """Pure-JAX reference mirroring the PyTorch forward."""
    im = im.astype(jnp.float32)
    s = s.astype(jnp.float32)
    scores = im @ s.T
    diag = jnp.diag(scores)[:, None]
    cost_s = jnp.maximum(margin + scores - diag, 0.0)
    cost_im = jnp.maximum(margin + scores - diag.T, 0.0)
    eye = jnp.eye(scores.shape[0], dtype=bool)
    cost_s = jnp.where(eye, 0.0, cost_s)
    cost_im = jnp.where(eye, 0.0, cost_im)
    return jnp.sum(cost_s) + jnp.sum(cost_im)


if __name__ == "__main__":
    key = jax.random.PRNGKey(0)
    cases = [
        # (B, D, dtype, margin, tile override)
        (8, 32, jnp.float32, 0.0, None),      # tiny batch, padded to one 128 tile
        (192, 64, jnp.float32, 0.2, None),    # ragged B + nonzero margin -> pad + mask
        (256, 128, jnp.bfloat16, 0.0, 128),   # forced 128 tiles -> 2x2 grid, diag tiles
    ]
    for B, D, dtype, margin, tile in cases:
        key, k_im, k_s = jax.random.split(key, 3)
        # Quantize inputs to bf16-representable values so the comparison against the
        # pure-JAX reference is insensitive to the MXU matmul precision mode.
        im = jax.random.normal(k_im, (B, D), jnp.float32).astype(jnp.bfloat16).astype(dtype)
        s = jax.random.normal(k_s, (B, D), jnp.float32).astype(jnp.bfloat16).astype(dtype)
        loss = jax.block_until_ready(contrastive_loss(im, s, margin, tile=tile))
        ref = jax.block_until_ready(_reference(im, s, margin))
        assert jnp.allclose(loss, ref, rtol=5e-4, atol=1e-2), (
            B, D, dtype, margin, float(loss), float(ref))
    print("KERNEL_OK")
</pallas_src>

<mosaic_0001>
module attributes {stable_mosaic.version = 11 : i64} {
  func.func @_diag_kernel(%arg0: i32, %arg1: memref<128x32xf32, #tpu.memory_space<vmem>>, %arg2: memref<128x32xf32, #tpu.memory_space<vmem>>, %arg3: memref<128x1xf32, #tpu.memory_space<vmem>>) attributes {dimension_semantics = [#tpu.dimension_semantics<parallel>], iteration_bounds = array<i64: 1>, scalar_prefetch = 0 : i64, scratch_operands = 0 : i64, tpu.core_type = #tpu.core_type<tc>, window_params = [{transform_indices = @transform_0, window_bounds = array<i64: 128, 32>}, {transform_indices = @transform_1, window_bounds = array<i64: 128, 32>}, {transform_indices = @transform_2, window_bounds = array<i64: 128, 1>}]} {
    %c0 = arith.constant 0 : index
    %c0_0 = arith.constant 0 : index
    %0 = vector.load %arg1[%c0, %c0_0] : memref<128x32xf32, #tpu.memory_space<vmem>>, vector<128x32xf32>
    %c0_1 = arith.constant 0 : index
    %c0_2 = arith.constant 0 : index
    %1 = vector.load %arg2[%c0_1, %c0_2] : memref<128x32xf32, #tpu.memory_space<vmem>>, vector<128x32xf32>
    %2 = arith.mulf %0, %1 : vector<128x32xf32>
    %cst = arith.constant dense<0.000000e+00> : vector<128xf32>
    %3 = vector.multi_reduction <add>, %2, %cst [1] : vector<128x32xf32> to vector<128xf32>
    %4 = vector.shape_cast %3 : vector<128xf32> to vector<128x1xf32>
    %c0_3 = arith.constant 0 : index
    %c0_4 = arith.constant 0 : index
    %5 = vector.load %arg3[%c0_3, %c0_4] : memref<128x1xf32, #tpu.memory_space<vmem>>, vector<128x1xf32>
    tpu.vector_store %arg3[%c0_3, %c0_4], %4 {strides = array<i32>} : memref<128x1xf32, #tpu.memory_space<vmem>>, vector<128x1xf32>,
    return
  }
  func.func @transform_0(%arg0: i32) -> (i32, i32) {
    %c0_i32 = arith.constant 0 : i32
    %c0_i32_0 = arith.constant 0 : i32
    return %arg0, %c0_i32 : i32, i32
  }
  func.func @transform_1(%arg0: i32) -> (i32, i32) {
    %c0_i32 = arith.constant 0 : i32
    %c0_i32_0 = arith.constant 0 : i32
    return %arg0, %c0_i32 : i32, i32
  }
  func.func @transform_2(%arg0: i32) -> (i32, i32) {
    %c0_i32 = arith.constant 0 : i32
    %c0_i32_0 = arith.constant 0 : i32
    return %arg0, %c0_i32 : i32, i32
  }
}

</mosaic_0001>

<llo_original>
// kernel: tpu_custom_call.1
$region0: #{tpu_custom_call.1}
  #allocation0 [shape = 'u32[]', space=smem, size = 0x4, offset = 0x4, fixed_abs, tag = 'smem constant byte address 0x4 - core index']
  #allocation1 [shape = 'u32[144,128]{1,0:T(1,128)}', space=vmem, size = 0x12000, scoped, tag = 'internal scratch']
  %s0 = inlined_call_operand.vmem [shape: f32[128,32], index: 0, kind: input, shape index: {}]
  %s1 = inlined_call_operand.vmem [shape: f32[128,32], index: 1, kind: input, shape index: {}]
  %s2 = inlined_call_operand.vmem [shape: f32[128,1], index: 2, kind: output, shape index: {}]
  %s3 = sld [smem:[#allocation0]]
  $region18: #{tpu_custom_call.1} parent=0
    _
  %s5 = ssub.s32 1, %s3
  %s6 = scalar_select 0, %s5, %s3
  // Predicated region
  $region2: #{tpu_custom_call.1} parent=0 // pred_check
    _
  $region3: #{tpu_custom_call.1} parent=0 // pred_check_branch
    %8 = sbr.rel (0) target = $region5
  $region4: #{tpu_custom_call.1} parent=0 // pred_region
    _
  $region5: #{tpu_custom_call.1} parent=0 // pred_fallthru
    _
  // Predicated region
  $region6: #{tpu_custom_call.1} parent=0 // pred_check
    _
  $region7: #{tpu_custom_call.1} parent=0 // pred_check_branch
    %10 = sbr.rel (0) target = $region9
  $region8: #{tpu_custom_call.1} parent=0 // pred_region
    _
  $region9: #{tpu_custom_call.1} parent=0 // pred_fallthru
    _
  %v11 = vld [vmem:[%s0] sm:$0xff]
  %v12 = vld [vmem:[%s0 + $0x8] sm:$0xff]
  %v13 = vld [vmem:[%s0 + $0x10] sm:$0xff]
  %v14 = vld [vmem:[%s0 + $0x18] sm:$0xff]
  %v15 = vld [vmem:[%s0 + $0x20] sm:$0xff]
  %v16 = vld [vmem:[%s0 + $0x28] sm:$0xff]
  %v17 = vld [vmem:[%s0 + $0x30] sm:$0xff]
  %v18 = vld [vmem:[%s0 + $0x38] sm:$0xff]
  %v19 = vld [vmem:[%s0 + $0x40] sm:$0xff]
  %v20 = vld [vmem:[%s0 + $0x48] sm:$0xff]
  %v21 = vld [vmem:[%s0 + $0x50] sm:$0xff]
  %v22 = vld [vmem:[%s0 + $0x58] sm:$0xff]
  %v23 = vld [vmem:[%s0 + $0x60] sm:$0xff]
  %v24 = vld [vmem:[%s0 + $0x68] sm:$0xff]
  %v25 = vld [vmem:[%s0 + $0x70] sm:$0xff]
  %v26 = vld [vmem:[%s0 + $0x78] sm:$0xff]
  %v27 = vld [vmem:[%s1] sm:$0xff]
  %v28 = vld [vmem:[%s1 + $0x8] sm:$0xff]
  %v29 = vld [vmem:[%s1 + $0x10] sm:$0xff]
  %v30 = vld [vmem:[%s1 + $0x18] sm:$0xff]
  %v31 = vld [vmem:[%s1 + $0x20] sm:$0xff]
  %v32 = vld [vmem:[%s1 + $0x28] sm:$0xff]
  %v33 = vld [vmem:[%s1 + $0x30] sm:$0xff]
  %v34 = vld [vmem:[%s1 + $0x38] sm:$0xff]
  %v35 = vld [vmem:[%s1 + $0x40] sm:$0xff]
  %v36 = vld [vmem:[%s1 + $0x48] sm:$0xff]
  %v37 = vld [vmem:[%s1 + $0x50] sm:$0xff]
  %v38 = vld [vmem:[%s1 + $0x58] sm:$0xff]
  %v39 = vld [vmem:[%s1 + $0x60] sm:$0xff]
  %v40 = vld [vmem:[%s1 + $0x68] sm:$0xff]
  %v41 = vld [vmem:[%s1 + $0x70] sm:$0xff]
  %v42 = vld [vmem:[%s1 + $0x78] sm:$0xff]
  %v43 = vmul.f32 %v11, %v27
  %v44 = vmul.f32 %v12, %v28
  %v45 = vmul.f32 %v13, %v29
  %v46 = vmul.f32 %v14, %v30
  %v47 = vmul.f32 %v15, %v31
  %v48 = vmul.f32 %v16, %v32
  %v49 = vmul.f32 %v17, %v33
  %v50 = vmul.f32 %v18, %v34
  %v51 = vmul.f32 %v19, %v35
  %v52 = vmul.f32 %v20, %v36
  %v53 = vmul.f32 %v21, %v37
  %v54 = vmul.f32 %v22, %v38
  %v55 = vmul.f32 %v23, %v39
  %v56 = vmul.f32 %v24, %v40
  %v57 = vmul.f32 %v25, %v41
  %v58 = vmul.f32 %v26, %v42
  %vm59 = vcmask 261120
  %v60 = vsel %vm59, %v43, 0.0
  %61 = vadd.xlane.f32.xlu0 %v60
  %v62 = vpop.xlane.xlu0 %61
  %v63 = vsel %vm59, %v44, 0.0
  %64 = vadd.xlane.f32.xlu0 %v63
  %v65 = vpop.xlane.xlu0 %64
  %v66 = vsel %vm59, %v45, 0.0
  %67 = vadd.xlane.f32.xlu0 %v66
  %v68 = vpop.xlane.xlu0 %67
  %v69 = vsel %vm59, %v46, 0.0
  %70 = vadd.xlane.f32.xlu0 %v69
  %v71 = vpop.xlane.xlu0 %70
  %v72 = vsel %vm59, %v47, 0.0
  %73 = vadd.xlane.f32.xlu0 %v72
  %v74 = vpop.xlane.xlu0 %73
  %v75 = vsel %vm59, %v48, 0.0
  %76 = vadd.xlane.f32.xlu0 %v75
  %v77 = vpop.xlane.xlu0 %76
  %v78 = vsel %vm59, %v49, 0.0
  %79 = vadd.xlane.f32.xlu0 %v78
  %v80 = vpop.xlane.xlu0 %79
  %v81 = vsel %vm59, %v50, 0.0
  %82 = vadd.xlane.f32.xlu0 %v81
  %v83 = vpop.xlane.xlu0 %82
  %v84 = vsel %vm59, %v51, 0.0
  %85 = vadd.xlane.f32.xlu0 %v84
  %v86 = vpop.xlane.xlu0 %85
  %v87 = vsel %vm59, %v52, 0.0
  %88 = vadd.xlane.f32.xlu0 %v87
  %v89 = vpop.xlane.xlu0 %88
  %v90 = vsel %vm59, %v53, 0.0
  %91 = vadd.xlane.f32.xlu0 %v90
  %v92 = vpop.xlane.xlu0 %91
  %v93 = vsel %vm59, %v54, 0.0
  %94 = vadd.xlane.f32.xlu0 %v93
  %v95 = vpop.xlane.xlu0 %94
  %v96 = vsel %vm59, %v55, 0.0
  %97 = vadd.xlane.f32.xlu0 %v96
  %v98 = vpop.xlane.xlu0 %97
  %v99 = vsel %vm59, %v56, 0.0
  %100 = vadd.xlane.f32.xlu0 %v99
  %v101 = vpop.xlane.xlu0 %100
  %v102 = vsel %vm59, %v57, 0.0
  %103 = vadd.xlane.f32.xlu0 %v102
  %v104 = vpop.xlane.xlu0 %103
  %v105 = vsel %vm59, %v58, 0.0
  %106 = vadd.xlane.f32.xlu0 %v105
  %v107 = vpop.xlane.xlu0 %106
  %vm108 = vcmask 7168
  %109 = vst.msk [vmem:[%s2] sm:$0xff] %vm108, %v62
  %110 = vst.msk [vmem:[%s2 + $0x8] sm:$0xff] %vm108, %v65
  %111 = vst.msk [vmem:[%s2 + $0x10] sm:$0xff] %vm108, %v68
  %112 = vst.msk [vmem:[%s2 + $0x18] sm:$0xff] %vm108, %v71
  %113 = vst.msk [vmem:[%s2 + $0x20] sm:$0xff] %vm108, %v74
  %114 = vst.msk [vmem:[%s2 + $0x28] sm:$0xff] %vm108, %v77
  %115 = vst.msk [vmem:[%s2 + $0x30] sm:$0xff] %vm108, %v80
  %116 = vst.msk [vmem:[%s2 + $0x38] sm:$0xff] %vm108, %v83
  %117 = vst.msk [vmem:[%s2 + $0x40] sm:$0xff] %vm108, %v86
  %118 = vst.msk [vmem:[%s2 + $0x48] sm:$0xff] %vm108, %v89
  %119 = vst.msk [vmem:[%s2 + $0x50] sm:$0xff] %vm108, %v92
  %120 = vst.msk [vmem:[%s2 + $0x58] sm:$0xff] %vm108, %v95
  %121 = vst.msk [vmem:[%s2 + $0x60] sm:$0xff] %vm108, %v98
  %122 = vst.msk [vmem:[%s2 + $0x68] sm:$0xff] %vm108, %v101
  %123 = vst.msk [vmem:[%s2 + $0x70] sm:$0xff] %vm108, %v104
  %124 = vst.msk [vmem:[%s2 + $0x78] sm:$0xff] %vm108, %v107
  // Predicated region
  $region10: #{tpu_custom_call.1} parent=0 // pred_check
    _
  $region11: #{tpu_custom_call.1} parent=0 // pred_check_branch
    %126 = sbr.rel (0) target = $region13
  $region12: #{tpu_custom_call.1} parent=0 // pred_region
    _
  $region13: #{tpu_custom_call.1} parent=0 // pred_fallthru
    _
  // Predicated region
  $region14: #{tpu_custom_call.1} parent=0 // pred_check
    _
  $region15: #{tpu_custom_call.1} parent=0 // pred_check_branch
    %128 = sbr.rel (0) target = $region17
  $region16: #{tpu_custom_call.1} parent=0 // pred_region
    _
  $region17: #{tpu_custom_call.1} parent=0 // pred_fallthru
    _

</llo_original>
